<compile_context>
chip_gen: v5e
topology: v5e:2x2
jax: 0.10.0
libtpu: 0.0.40
codegen_flags: <defaults>
</compile_context>

<pallas_src>
import jax
import jax.numpy as jnp
from jax.experimental import pallas as pl
from jax.experimental.pallas import tpu as pltpu


_LANE = 128     # TPU lane width: block last dim should be a multiple of this
_SUBLANE = 8    # sublane width: block second-to-last dim multiple (or full extent)


def _round_up(x, m):
    return x + (-x) % m


def _cdiv(a, b):
    return -(-a // b)


# -----------------------------------------------------------------------------
# Kernels
# -----------------------------------------------------------------------------
def _linear_kernel(x_ref, w_ref, b_ref, o_ref):
    """Single-shot K: out tile = x @ W^T tile + bias (f32 accumulation on MXU)."""
    x = x_ref[...].astype(w_ref.dtype)                       # bf16 feed to the MXU
    acc = jnp.dot(x, w_ref[...], preferred_element_type=jnp.float32)
    o_ref[...] = (acc + b_ref[...]).astype(o_ref.dtype)      # bias in f32, one cast


def _make_ktiled_kernel(tk, k_rem):
    """K-tiled variant: grid axis 2 is the ("arbitrary") reduction over K with an
    f32 VMEM accumulator.  `k_rem` (= in_dim % tk, Python constant) != 0 means the
    last K block is ragged; mask both operands so garbage never hits the MXU."""
    def kernel(x_ref, w_ref, b_ref, o_ref, acc_ref):
        k = pl.program_id(2)
        nk = pl.num_programs(2)

        @pl.when(k == 0)
        def _():
            acc_ref[...] = jnp.zeros_like(acc_ref)

        x = x_ref[...]
        w = w_ref[...]
        if k_rem:  # static: only emitted when the last K block is ragged
            limit = jnp.where(k == nk - 1, k_rem, tk)
            kcol = jax.lax.broadcasted_iota(jnp.int32, x.shape, 1)
            x = jnp.where(kcol < limit, x, 0)
            krow = jax.lax.broadcasted_iota(jnp.int32, w.shape, 0)
            w = jnp.where(krow < limit, w, 0)

        acc_ref[...] += jnp.dot(x.astype(w.dtype), w,
                                preferred_element_type=jnp.float32)

        @pl.when(k == nk - 1)
        def _():
            o_ref[...] = (acc_ref[...] + b_ref[...]).astype(o_ref.dtype)

    return kernel


# -----------------------------------------------------------------------------
# Parameter prep (one time, at load — never per forward call)
# -----------------------------------------------------------------------------
def prepare_mvf_params(weight, bias, *, compute_dtype=jnp.bfloat16):
    """Transpose W [out, in] -> [in, out], zero-pad out_dim up to a multiple of
    128 (full / lane-aligned weight blocks), cast W to the MXU compute dtype
    (bf16 by default; pass jnp.float32 for a full-precision path) and bias to
    f32.  Returns (w_t, b2d, out_dim)."""
    out_dim, in_dim = weight.shape
    n_pad = _round_up(out_dim, _LANE)
    w_t = jnp.transpose(weight)                         # [in_dim, out_dim]
    b = bias
    if n_pad != out_dim:
        w_t = jnp.pad(w_t, ((0, 0), (0, n_pad - out_dim)))
        b = jnp.pad(b, (0, n_pad - out_dim))
    w_t = w_t.astype(compute_dtype)
    b2d = b.reshape(1, n_pad).astype(jnp.float32)
    return w_t, b2d, out_dim


# -----------------------------------------------------------------------------
# Sizing helpers
# -----------------------------------------------------------------------------
def _vmem_info():
    """(budget for kernel buffers, physical per-core VMEM capacity) in bytes."""
    try:
        cap = int(pltpu.get_tpu_info().vmem_capacity_bytes)
    except Exception:
        cap = 64 << 20          # conservative fallback (v7x per-TensorCore size)
    return int(cap * 0.72), cap


def _buf_bytes(tm, tn, tk, x_item, w_item, out_item, ktiled):
    """Per-step VMEM footprint (double-buffered tiles + accumulator scratch)."""
    b = 2 * tm * tk * x_item          # x tiles
    b += 2 * tk * tn * w_item         # W^T tiles
    b += 2 * tn * 4                   # f32 bias tiles
    b += 2 * tm * tn * out_item       # output tiles
    if ktiled:
        b += tm * tn * 4              # f32 accumulator scratch
    return b


# -----------------------------------------------------------------------------
# Forward
# -----------------------------------------------------------------------------
def mvf_transformer_forward(face_feat, w_t, b2d, out_dim, *,
                            tile_m=512, interpret=False):
    """face_feat: [..., in_dim]; (w_t, b2d, out_dim) from prepare_mvf_params."""
    in_dim, n_pad = w_t.shape
    lead_shape = face_feat.shape[:-1]

    x2d = face_feat.reshape(-1, in_dim)         # no padding / extra HBM copy of x
    m = x2d.shape[0]
    out_dtype = face_feat.dtype
    x_item = x2d.dtype.itemsize
    w_item = w_t.dtype.itemsize
    out_item = jnp.dtype(out_dtype).itemsize

    # Output columns: keep lane-padding (+tiny post-slice) only when out_dim < 128
    # (lane-dense stores matter most there).  Otherwise store straight into
    # (m, out_dim); the single ragged last N tile uses masked stores, which is far
    # cheaper than a full extra HBM pass to slice off padding columns.
    out_cols = n_pad if out_dim < _LANE else out_dim

    budget, cap = _vmem_info()

    # --- Tile selection ------------------------------------------------------
    tile_m = max(_SUBLANE, (tile_m // _SUBLANE) * _SUBLANE)
    tm = m if m <= tile_m else tile_m
    tn = n_pad                                   # weight-resident by default
    tk = in_dim
    ktiled = False

    def fits(tm_, tn_, tk_, kt):
        return _buf_bytes(tm_, tn_, tk_, x_item, w_item, out_item, kt) <= budget

    # 1) Shrink tn first (keeps tm = per-weight-byte reuse factor / MXU M fill).
    while not fits(tm, tn, tk, ktiled) and tn > _LANE:
        tn = max(_LANE, _round_up(tn // 2, _LANE))
    # 2) Then shrink tm, but keep it >= 128 (or the full m when m is small).
    tm_floor = min(tm, _LANE)
    while not fits(tm, tn, tk, ktiled) and tm > tm_floor:
        tm = max(tm_floor, ((tm // 2) // _SUBLANE) * _SUBLANE)
    # 3) K-tiling fallback for very large in_dim (bounded VMEM, esp. v7x 64 MiB).
    if not fits(tm, tn, tk, False):
        ktiled = True
        tk = _round_up(in_dim, _LANE)
        while not fits(tm, tn, tk, True) and tk > _LANE:
            tk = max(_LANE, _round_up(tk // 2, _LANE))
        while not fits(tm, tn, tk, True) and tm > _SUBLANE:
            tm = max(_SUBLANE, ((tm // 2) // _SUBLANE) * _SUBLANE)
        if tk >= in_dim:                         # degenerate: K fits in one block
            ktiled, tk = False, in_dim

    grid_m = _cdiv(m, tm)
    grid_n = _cdiv(n_pad, tn)
    grid_k = _cdiv(in_dim, tk) if ktiled else 1

    # Guarantee >= 2 steps along a "parallel" axis so both of v7x's TensorCores
    # get work even when the whole problem fits a single tile.  Cheap elsewhere:
    # the non-split operand's index map stays constant, so it is not re-DMA'd.
    if grid_m == 1 and grid_n == 1:
        if n_pad >= 2 * _LANE:
            tn = _round_up(_cdiv(n_pad, 2), _LANE)
            grid_n = _cdiv(n_pad, tn)
        elif m >= 2 * _SUBLANE:
            tm = _round_up(_cdiv(m, 2), _SUBLANE)
            grid_m = _cdiv(m, tm)

    # Grid ordering: when the weight must be N-tiled and M is also tiled, place
    # the axis of the heavier re-streamed operand outermost.  (Only matters when
    # there is no K axis; with K innermost both operands re-stream anyway.)
    w_bytes = in_dim * n_pad * w_item
    x_bytes = m * in_dim * x_item
    m_first = True
    if (not ktiled) and grid_n > 1 and grid_m > 1:
        # A (M outer, N inner): x once + W x grid_m ; B (N outer, M inner): W once + x x grid_n
        if (w_bytes + grid_n * x_bytes) < (grid_m * w_bytes + x_bytes):
            m_first = False

    if ktiled:
        grid = (grid_m, grid_n, grid_k)
        x_map = lambda i, j, k: (i, k)
        w_map = lambda i, j, k: (k, j)
        b_map = lambda i, j, k: (0, j)
        o_map = lambda i, j, k: (i, j)
        sems = ("parallel", "parallel", "arbitrary")
        kernel = _make_ktiled_kernel(tk, in_dim % tk)
        scratch = [pltpu.VMEM((tm, tn), jnp.float32)]
        x_block, w_block = (tm, tk), (tk, tn)
    else:
        if m_first:
            grid = (grid_m, grid_n)
            x_map = lambda i, j: (i, 0)
            w_map = lambda i, j: (0, j)
            b_map = lambda i, j: (0, j)
            o_map = lambda i, j: (i, j)
        else:
            grid = (grid_n, grid_m)
            x_map = lambda j, i: (i, 0)
            w_map = lambda j, i: (0, j)
            b_map = lambda j, i: (0, j)
            o_map = lambda j, i: (i, j)
        sems = ("parallel", "parallel")
        kernel = _linear_kernel
        scratch = []
        x_block, w_block = (tm, in_dim), (in_dim, tn)

    buf = _buf_bytes(tm, tn, tk if ktiled else in_dim, x_item, w_item, out_item, ktiled)
    # buf already counts double-buffering; just add headroom for Mosaic-internal
    # scratch/semaphores and keep a safety margin below physical capacity.
    vmem_limit = int(min(max(buf + (4 << 20), 32 << 20), cap - (8 << 20)))

    cost = pl.CostEstimate(
        flops=2 * m * in_dim * n_pad,
        bytes_accessed=int(x_bytes + w_bytes + n_pad * 4 + m * out_cols * out_item),
        transcendentals=0,
    )

    out = pl.pallas_call(
        kernel,
        out_shape=jax.ShapeDtypeStruct((m, out_cols), out_dtype),
        grid_spec=pltpu.PrefetchScalarGridSpec(
            num_scalar_prefetch=0,
            grid=grid,
            in_specs=[
                pl.BlockSpec(x_block, x_map),     # activation rows
                pl.BlockSpec(w_block, w_map),     # bf16 W^T tile
                pl.BlockSpec((1, tn), b_map),     # f32 bias tile
            ],
            out_specs=pl.BlockSpec((tm, tn), o_map),
            scratch_shapes=scratch,
        ),
        compiler_params=pltpu.CompilerParams(
            dimension_semantics=sems,
            vmem_limit_bytes=vmem_limit,
        ),
        cost_estimate=cost,
        interpret=interpret,
    )(x2d, w_t, b2d)

    if out_cols != out_dim:
        out = out[:, :out_dim]        # only the tiny out_dim < 128 padded path
    return out.reshape(*lead_shape, out_dim)


def init_mvf_transformer_params(key, input_dim, out_dim, dtype=jnp.float32):
    """Deterministic init matching nn.Linear shapes (W: [out,in], b: [out])."""
    kw, kb = jax.random.split(key)
    bound = float(input_dim) ** -0.5
    weight = jax.random.uniform(kw, (out_dim, input_dim), dtype, -bound, bound)
    bias = jax.random.uniform(kb, (out_dim,), dtype, -bound, bound)
    return weight, bias


if __name__ == "__main__":
    key = jax.random.PRNGKey(0)
    k_x, k_p = jax.random.split(key)

    batch, seq, input_dim, out_dim = 2, 8, 32, 64
    face_feat = jax.random.normal(k_x, (batch, seq, input_dim), jnp.float32)
    weight, bias = init_mvf_transformer_params(k_p, input_dim, out_dim)

    # One-time param prep (transpose + lane-pad + bf16 cast), then the kernel.
    w_t, b2d, out_d = prepare_mvf_params(weight, bias)
    out = mvf_transformer_forward(face_feat, w_t, b2d, out_d)
    out = jax.block_until_ready(out)

    # Correctness check vs. plain-JAX f32 reference of nn.Linear.
    ref = face_feat @ weight.T + bias
    assert out.shape == (batch, seq, out_dim)
    # bf16 MXU inputs with f32 accumulation -> slightly loosened tolerance.
    assert jnp.allclose(out, ref, atol=3e-2, rtol=3e-2), float(jnp.max(jnp.abs(out - ref)))

    print("KERNEL_OK")
</pallas_src>

<mosaic_0001>
module attributes {stable_mosaic.version = 11 : i64} {
  func.func @_linear_kernel(%arg0: i32, %arg1: i32, %arg2: memref<8x32xf32, #tpu.memory_space<vmem>>, %arg3: memref<32x128xbf16, #tpu.memory_space<vmem>>, %arg4: memref<1x128xf32, #tpu.memory_space<vmem>>, %arg5: memref<8x128xf32, #tpu.memory_space<vmem>>) attributes {dimension_semantics = [#tpu.dimension_semantics<parallel>, #tpu.dimension_semantics<parallel>], iteration_bounds = array<i64: 2, 1>, scalar_prefetch = 0 : i64, scratch_operands = 0 : i64, tpu.core_type = #tpu.core_type<tc>, window_params = [{transform_indices = @transform_0, window_bounds = array<i64: 8, 32>}, {transform_indices = @transform_1, window_bounds = array<i64: 32, 128>}, {transform_indices = @transform_2, window_bounds = array<i64: 1, 128>}, {transform_indices = @transform_3, window_bounds = array<i64: 8, 128>}]} {
    %c0 = arith.constant 0 : index
    %c0_0 = arith.constant 0 : index
    %0 = vector.load %arg2[%c0, %c0_0] : memref<8x32xf32, #tpu.memory_space<vmem>>, vector<8x32xf32>
    %1 = arith.truncf %0 : vector<8x32xf32> to vector<8x32xbf16>
    %c0_1 = arith.constant 0 : index
    %c0_2 = arith.constant 0 : index
    %2 = vector.load %arg3[%c0_1, %c0_2] : memref<32x128xbf16, #tpu.memory_space<vmem>>, vector<32x128xbf16>
    %cst = arith.constant dense<0.000000e+00> : vector<8x128xf32>
    %3 = tpu.matmul %1, %2, %cst {dimension_numbers = #tpu.dot_dimension_numbers<[1], [0], [0], [1], [0, 0, 1, 1], [], []>} : vector<8x32xbf16>, vector<32x128xbf16>, vector<8x128xf32> -> vector<8x128xf32>
    %c0_3 = arith.constant 0 : index
    %c0_4 = arith.constant 0 : index
    %4 = vector.load %arg4[%c0_3, %c0_4] : memref<1x128xf32, #tpu.memory_space<vmem>>, vector<1x128xf32>
    %5 = vector.broadcast %4 : vector<1x128xf32> to vector<8x128xf32>
    %6 = arith.addf %3, %5 : vector<8x128xf32>
    %c0_5 = arith.constant 0 : index
    %c0_6 = arith.constant 0 : index
    %7 = vector.load %arg5[%c0_5, %c0_6] : memref<8x128xf32, #tpu.memory_space<vmem>>, vector<8x128xf32>
    tpu.vector_store %arg5[%c0_5, %c0_6], %6 {strides = array<i32>} : memref<8x128xf32, #tpu.memory_space<vmem>>, vector<8x128xf32>,
    return
  }
  func.func @transform_0(%arg0: i32, %arg1: i32) -> (i32, i32) {
    %c0_i32 = arith.constant 0 : i32
    %c0_i32_0 = arith.constant 0 : i32
    return %arg0, %c0_i32 : i32, i32
  }
  func.func @transform_1(%arg0: i32, %arg1: i32) -> (i32, i32) {
    %c0_i32 = arith.constant 0 : i32
    %c0_i32_0 = arith.constant 0 : i32
    return %c0_i32, %arg1 : i32, i32
  }
  func.func @transform_2(%arg0: i32, %arg1: i32) -> (i32, i32) {
    %c0_i32 = arith.constant 0 : i32
    %c0_i32_0 = arith.constant 0 : i32
    return %c0_i32, %arg1 : i32, i32
  }
  func.func @transform_3(%arg0: i32, %arg1: i32) -> (i32, i32) {
    %c0_i32 = arith.constant 0 : i32
    return %arg0, %arg1 : i32, i32
  }
}

</mosaic_0001>

<llo_original>
// kernel: tpu_custom_call.1
$region0: #{tpu_custom_call.1}
  #allocation0 [shape = 'u32[]', space=smem, size = 0x4, offset = 0x4, fixed_abs, tag = 'smem constant byte address 0x4 - core index']
  #allocation1 [shape = 'u32[72,128]{1,0:T(1,128)}', space=vmem, size = 0x9000, scoped, tag = 'internal scratch']
  %s0 = inlined_call_operand.hbm [shape: f32[16,32], index: 0, kind: input, shape index: {}]
  %s1 = inlined_call_operand.hbm [shape: bf16[32,128], index: 1, kind: input, shape index: {}]
  %s2 = inlined_call_operand.vmem [shape: f32[1,128], index: 2, kind: input, shape index: {}]
  %s3 = inlined_call_operand.hbm [shape: f32[16,128], index: 3, kind: output, shape index: {}]
  %s4 = sld [smem:[#allocation0]]
  $region53: #{tpu_custom_call.1} parent=0
    _
  %s6 = ssub.s32 1, %s4
  %s7 = scalar_select 0, %s6, %s4
  $region1: #{tpu_custom_call.1} parent=0
    #allocation2 [shape = 'u8[8192]{0}', space=vmem, size = 0x2000, scoped, tag = 'input window, operand 0']
    #allocation3 [shape = 's32[2]{0}', space=sflag, size = 0x8, scoped, tag = 'scoped memory for tpu_custom_call.1']
    #allocation4 [shape = 's32[2]{0}', space=sflag, size = 0x8, scoped, tag = 'scoped memory for tpu_custom_call.1']
    #allocation5 [shape = 'u8[8192]{0}', space=vmem, size = 0x2000, scoped, tag = 'input window, operand 1, single buffered']
    #allocation6 [shape = 's32[1]{0}', space=sflag, size = 0x4, scoped, tag = 'scoped memory for tpu_custom_call.1']
    #allocation7 [shape = 'u8[8192]{0}', space=vmem, size = 0x2000, scoped, tag = 'output window, operand 0']
    %8 = vsyncpa [#allocation3], 0
    %s9 = scalar_lea.sflag [#allocation3], 1
    %10 = vsyncpa %s9, 0
    %11 = vsyncpa [#allocation6], 0
    %12 = vsyncpa [#allocation4], 0
    %s13 = scalar_lea.sflag [#allocation4], 1
    %14 = vsyncpa %s13, 0
    loop: start=0, step=1, limit=4
    $region2: #{tpu_custom_call.1} parent=1 // loop_pre_header
      _
    $region3: #{tpu_custom_call.1} parent=1 // loop_header
      %s16 = sphi 0, %s20
      %p17 = scmp.ge.s32.totalorder %s16, 4
      %s23 = sphi 0, %s35
      %s24 = sphi 0, %s31
      %s25 = sphi 0, %s23
      %s26 = sphi 0, %s24
      %s27 = sphi 0, %s25
      %s28 = sphi 0, %s26
      %s38 = sphi 0, %s40
      %s41 = sphi 0, %s38
      %s42 = sphi 0, %s41
      %s58 = sphi 0, %s42
      %s64 = sphi 0, %s66
      %s67 = sphi 0, %s64
      %s68 = sphi 0, %s67
      %s84 = sphi 0, %s68
      %s90 = sphi 0, %s92
      %s93 = sphi 0, %s90
      %s94 = sphi 0, %s93
      %s110 = sphi 0, %s94
      %s118 = sphi 0, %s120
      %s121 = sphi 0, %s118
      %s122 = sphi 0, %s121
      %s138 = sphi 0, %s122
    $region4: #{tpu_custom_call.1} parent=1 // loop_header_branch
      %19 = sbr.rel (%p17) target = $region8
    $region5: #{tpu_custom_call.1} parent=1 // loop_body
      %s21 = ssub.s32 %s16, 1
      %s22 = ssub.s32 %s16, 2
      %s29 = sadd.s32 1, %s24
      %p30 = scmp.ge.s32.totalorder %s29, 1
      %s31 = scalar_select %p30, 0, %s29
      %s32 = sadd.s32 1, %s23
      %s33 = scalar_select %p30, %s32, %s23
      %p34 = scmp.ge.s32.totalorder %s33, 2
      %s35 = scalar_select %p34, 0, %s33
      %s36 = ssub.s32 %s23, %s35
      %p37 = scmp.eq.s32.totalorder %s36, 0
      %s39 = sadd.s32 %s38, 1
      %s40 = scalar_select %p37, %s38, %s39
      %p43 = pneg %p37
      %p44 = scmp.eq.s32.totalorder %s16, 1
      %p45 = por %p43, %p44
      %p46 = scmp.ne.s32.totalorder %s38, %s41
      %p47 = scmp.eq.s32.totalorder %s16, 0
      %p48 = por %p46, %p47
      %p49 = scmp.ne.s32.totalorder %s38, %s41
      %p50 = scmp.eq.s32.totalorder %s21, 1
      %p51 = por %p49, %p50
      %p52 = scmp.ne.s32.totalorder %s41, %s42
      %p53 = scmp.eq.s32.totalorder %s21, 0
      %p54 = por %p52, %p53
      %p55 = scmp.ne.s32.totalorder %s41, %s42
      %p56 = scmp.eq.s32.totalorder %s22, 1
      %p57 = por %p55, %p56
      %p59 = scmp.ne.s32.totalorder %s42, %s58
      %p60 = scmp.eq.s32.totalorder %s22, 0
      %p61 = por %p59, %p60
      %s62 = ssub.s32 %s24, %s31
      %p63 = scmp.eq.s32.totalorder %s62, 0
      %s65 = sadd.s32 %s64, 1
      %s66 = scalar_select %p63, %s64, %s65
      %p69 = pneg %p63
      %p70 = scmp.eq.s32.totalorder %s16, 1
      %p71 = por %p69, %p70
      %p72 = scmp.ne.s32.totalorder %s64, %s67
      %p73 = scmp.eq.s32.totalorder %s16, 0
      %p74 = por %p72, %p73
      %p75 = scmp.ne.s32.totalorder %s64, %s67
      %p76 = scmp.eq.s32.totalorder %s21, 1
      %p77 = por %p75, %p76
      %p78 = scmp.ne.s32.totalorder %s67, %s68
      %p79 = scmp.eq.s32.totalorder %s21, 0
      %p80 = por %p78, %p79
      %p81 = scmp.ne.s32.totalorder %s67, %s68
      %p82 = scmp.eq.s32.totalorder %s22, 1
      %p83 = por %p81, %p82
      %p85 = scmp.ne.s32.totalorder %s68, %s84
      %p86 = scmp.eq.s32.totalorder %s22, 0
      %p87 = por %p85, %p86
      %s88 = ssub.s32 %s24, %s31
      %p89 = scmp.eq.s32.totalorder %s88, 0
      %s91 = sadd.s32 %s90, 1
      %s92 = scalar_select %p89, %s90, %s91
      %p95 = pneg %p89
      %p96 = scmp.eq.s32.totalorder %s16, 1
      %p97 = por %p95, %p96
      %p98 = scmp.ne.s32.totalorder %s90, %s93
      %p99 = scmp.eq.s32.totalorder %s16, 0
      %p100 = por %p98, %p99
      %p101 = scmp.ne.s32.totalorder %s90, %s93
      %p102 = scmp.eq.s32.totalorder %s21, 1
      %p103 = por %p101, %p102
      %p104 = scmp.ne.s32.totalorder %s93, %s94
      %p105 = scmp.eq.s32.totalorder %s21, 0
      %p106 = por %p104, %p105
      %p107 = scmp.ne.s32.totalorder %s93, %s94
      %p108 = scmp.eq.s32.totalorder %s22, 1
      %p109 = por %p107, %p108
      %p111 = scmp.ne.s32.totalorder %s94, %s110
      %p112 = scmp.eq.s32.totalorder %s22, 0
      %p113 = por %p111, %p112
      %s114 = ssub.s32 %s23, %s35
      %s115 = ssub.s32 %s24, %s31
      %s116 = sor.u32 %s114, %s115
      %p117 = scmp.eq.s32.totalorder %s116, 0
      %s119 = sadd.s32 %s118, 1
      %s120 = scalar_select %p117, %s118, %s119
      %p123 = pneg %p117
      %p124 = scmp.eq.s32.totalorder %s16, 1
      %p125 = por %p123, %p124
      %p126 = scmp.ne.s32.totalorder %s118, %s121
      %p127 = scmp.eq.s32.totalorder %s16, 0
      %p128 = por %p126, %p127
      %p129 = scmp.ne.s32.totalorder %s118, %s121
      %p130 = scmp.eq.s32.totalorder %s21, 1
      %p131 = por %p129, %p130
      %p132 = scmp.ne.s32.totalorder %s121, %s122
      %p133 = scmp.eq.s32.totalorder %s21, 0
      %p134 = por %p132, %p133
      %p135 = scmp.ne.s32.totalorder %s121, %s122
      %p136 = scmp.eq.s32.totalorder %s22, 1
      %p137 = por %p135, %p136
      %p139 = scmp.ne.s32.totalorder %s122, %s138
      %p140 = scmp.eq.s32.totalorder %s22, 0
      %p141 = por %p139, %p140
      %p142 = scmp.le.s32.totalorder 1, %s16
      %p143 = scmp.lt.s32.totalorder %s16, 3
      %p144 = pnand %p142, %p143
      %p145 = pneg %p144
      // Predicated region
      $region9: #{tpu_custom_call.1} parent=5 // pred_check
        _
      $region10: #{tpu_custom_call.1} parent=5 // pred_check_branch
        %147 = sbr.rel (%p144) target = $region12
      $region11: #{tpu_custom_call.1} parent=5 // pred_region
        %s148 = ssub.s32 %s16, 1
        // Predicated region
        $region13: #{tpu_custom_call.1} parent=11 // pred_check
          %p149 = pneg %p80
        $region14: #{tpu_custom_call.1} parent=11 // pred_check_branch
          %151 = sbr.rel (%p149) target = $region16
        $region15: #{tpu_custom_call.1} parent=11 // pred_region
          %153 = vsyncadd [#allocation6], 0
          %s154 = smul.addr %s26, 4
          %s155 = scalar_lea.hbm %s1, %s154
          %s156 = sshll.u32 %s155, 4
          %s157 = int_to_ptr.hbm [resolvable:$true] %s156
          %s158 = sshll.u32 [#allocation5], 4
          %s159 = int_to_ptr.vmem [resolvable:$true] %s158
          %164 = dma.hbm_to_vmem [thread:$0]  %s157, 256, %s159, [#allocation6], 64, 64, 4
        $region16: #{tpu_custom_call.1} parent=11 // pred_fallthru
          _
        // Predicated region
        $region17: #{tpu_custom_call.1} parent=11 // pred_check
          %p165 = pneg %p106
        $region18: #{tpu_custom_call.1} parent=11 // pred_check_branch
          %167 = sbr.rel (%p165) target = $region20
        $region19: #{tpu_custom_call.1} parent=11 // pred_region
          %p168 = scmp.lt.s32.totalorder %s26, 0
          %s169 = scalar_select %p168, %s26, 0
          %s170 = scalar_lea.vmem %s2, %s169
        $region20: #{tpu_custom_call.1} parent=11 // pred_fallthru
          _
      $region12: #{tpu_custom_call.1} parent=5 // pred_fallthru
        _
      %p171 = scmp.lt.s32.totalorder %s16, 2
      // Predicated region
      $region21: #{tpu_custom_call.1} parent=5 // pred_check
        %p172 = pneg %p171
      $region22: #{tpu_custom_call.1} parent=5 // pred_check_branch
        %174 = sbr.rel (%p172) target = $region24
      $region23: #{tpu_custom_call.1} parent=5 // pred_region
        // Predicated region
        $region25: #{tpu_custom_call.1} parent=23 // pred_check
          %p175 = pneg %p48
        $region26: #{tpu_custom_call.1} parent=23 // pred_check_branch
          %177 = sbr.rel (%p175) target = $region28
        $region27: #{tpu_custom_call.1} parent=23 // pred_region
          %s178 = sand.u32 %s38, 1
          %s179 = scalar_lea.sflag [#allocation3], %s178
          %s180 = sand.u32 %s38, 1
          %s181 = smul.addr %s180, 8
          %s182 = scalar_lea.vmem [#allocation2], %s181
          %184 = vsyncadd %s179, 0
          %s185 = smul.addr %s23, 8
          %s186 = scalar_lea.hbm %s0, %s185
          %s188 = sshll.u32 %s186, 4
          %s189 = int_to_ptr.hbm [resolvable:$true] %s188
          %s190 = sshll.u32 %s182, 4
          %s191 = int_to_ptr.vmem [resolvable:$true] %s190
          %193 = dma.hbm_to_vmem [thread:$0]  %s189, 128, %s191, %s179
        $region28: #{tpu_custom_call.1} parent=23 // pred_fallthru
          _
      $region24: #{tpu_custom_call.1} parent=5 // pred_fallthru
        _
      %p194 = scmp.le.s32.totalorder 1, %s16
      %p195 = scmp.lt.s32.totalorder %s16, 3
      %p196 = pnand %p194, %p195
      %p197 = pneg %p196
      // Predicated region
      $region29: #{tpu_custom_call.1} parent=5 // pred_check
        _
      $region30: #{tpu_custom_call.1} parent=5 // pred_check_branch
        %199 = sbr.rel (%p196) target = $region32
      $region31: #{tpu_custom_call.1} parent=5 // pred_region
        %s200 = ssub.s32 %s16, 1
        %s201 = sand.u32 %s41, 1
        %s202 = scalar_lea.sflag [#allocation3], %s201
        %s203 = sand.u32 %s41, 1
        %s204 = smul.addr %s203, 8
        %s205 = scalar_lea.vmem [#allocation2], %s204
        // Predicated region
        $region33: #{tpu_custom_call.1} parent=31 // pred_check
          %p206 = pneg %p54
        $region34: #{tpu_custom_call.1} parent=31 // pred_check_branch
          %208 = sbr.rel (%p206) target = $region36
        $region35: #{tpu_custom_call.1} parent=31 // pred_region
          %210 = dma.done %s202, 128
        $region36: #{tpu_custom_call.1} parent=31 // pred_fallthru
          _
        // Predicated region
        $region37: #{tpu_custom_call.1} parent=31 // pred_check
          %p211 = pneg %p80
        $region38: #{tpu_custom_call.1} parent=31 // pred_check_branch
          %213 = sbr.rel (%p211) target = $region40
        $region39: #{tpu_custom_call.1} parent=31 // pred_region
          %215 = dma.done [#allocation6], 256
        $region40: #{tpu_custom_call.1} parent=31 // pred_fallthru
          _
        %s216 = sand.u32 %s41, 1
        %s217 = scalar_lea.sflag [#allocation3], %s216
        %s218 = sand.u32 %s41, 1
        %s219 = smul.addr %s218, 8
        %s220 = scalar_lea.vmem [#allocation2], %s219
        %p221 = pneg %p54
        %p222 = pneg %p51
        %p223 = pneg %p80
        %p224 = pneg %p77
        %p225 = scmp.lt.s32.totalorder %s26, 0
        %s226 = scalar_select %p225, %s26, 0
        %s227 = scalar_lea.vmem %s2, %s226
        %p228 = pneg %p106
        %p229 = pneg %p103
        %p230 = pneg %p134
        %p231 = pneg %p131
        %s232 = sand.u32 %s121, 1
        %s233 = scalar_lea.sflag [#allocation4], %s232
        %s234 = sand.u32 %s121, 1
        %s235 = smul.addr %s234, 8
        %s236 = scalar_lea.vmem [#allocation7], %s235
        %p237 = scmp.lt.s32.totalorder %s26, 0
        %s238 = scalar_select %p237, %s26, 0
        %s239 = scalar_lea.vmem %s2, %s238
        %v241 = vld [vmem:[%s205] sm:$0xff]
        %v242 = vpack.c.bf16 %v241, %v241
        %v243 = vld [vmem:[#allocation5] sm:$0xf]
        %v244 = vld [vmem:[#allocation5 + $0x4] sm:$0xf]
        %v245 = vld [vmem:[#allocation5 + $0x8] sm:$0xf]
        %v246 = vld [vmem:[#allocation5 + $0xc] sm:$0xf]
        %v247 = vld [vmem:[%s239] sm:$0x1]
        %v249 = vperm.slane %v247, 0
        %v255 = vunpack.c.l.b16 %v243
        %v256 = vunpack.c.l.b16 %v244
        %v257 = vunpack.c.l.b16 %v245
        %v258 = vunpack.c.l.b16 %v246
        %v259 = vpack.c.b16 %v256, %v255
        %v260 = vpack.c.b16 %v258, %v257
        %vm263 = vcmask 261120
        %v265 = vsel %vm263, %v242, 0
        %267 = vmatpush.bf16.msra.mxu0 0
        %268 = vmatpush.bf16.msra.mxu0 0
        %269 = vmatpush.bf16.msra.mxu0 0
        %270 = vmatpush.bf16.msra.mxu0 0
        %271 = vmatpush.bf16.msra.mxu0 0
        %272 = vmatpush.bf16.msra.mxu0 0
        %273 = vmatpush.bf16.msra.mxu0 %v260
        %274 = vmatpush.bf16.msra.mxu0 %v259
        %275 = vmatmul.bf16.gmra.mxu0 %v265
        %v276 = vpop.f32.mrf.mxu0
        %v277 = vadd.f32 %v249, %v276
        %v278 = vpop.f32.mrf.mxu0
        %279 = vdwg.mxu0
        %280 = vst [vmem:[%s236] sm:$0xff] %v277
        %s281 = sand.u32 %s121, 1
        %s282 = scalar_lea.sflag [#allocation4], %s281
        %s283 = sand.u32 %s121, 1
        %s284 = smul.addr %s283, 8
        %s285 = scalar_lea.vmem [#allocation7], %s284
        // Predicated region
        $region41: #{tpu_custom_call.1} parent=31 // pred_check
          %p286 = pneg %p131
        $region42: #{tpu_custom_call.1} parent=31 // pred_check_branch
          %288 = sbr.rel (%p286) target = $region44
        $region43: #{tpu_custom_call.1} parent=31 // pred_region
          %290 = vsyncadd %s282, 0
          %s291 = sadd.s32 %s26, %s25
          %s292 = smul.addr %s291, 8
          %s293 = scalar_lea.hbm %s3, %s292
          %s295 = sshll.u32 %s285, 4
          %s296 = int_to_ptr.vmem [resolvable:$true] %s295
          %s297 = sshll.u32 %s293, 4
          %s298 = int_to_ptr.hbm [resolvable:$true] %s297
          %300 = dma.vmem_to_hbm [thread:$0]  %s296, 128, %s298, %s282
        $region44: #{tpu_custom_call.1} parent=31 // pred_fallthru
          _
      $region32: #{tpu_custom_call.1} parent=5 // pred_fallthru
        _
      %p301 = scmp.le.s32.totalorder 2, %s16
      // Predicated region
      $region45: #{tpu_custom_call.1} parent=5 // pred_check
        %p302 = pneg %p301
      $region46: #{tpu_custom_call.1} parent=5 // pred_check_branch
        %304 = sbr.rel (%p302) target = $region48
      $region47: #{tpu_custom_call.1} parent=5 // pred_region
        %s305 = ssub.s32 %s16, 2
        // Predicated region
        $region49: #{tpu_custom_call.1} parent=47 // pred_check
          %p306 = pneg %p137
        $region50: #{tpu_custom_call.1} parent=47 // pred_check_branch
          %308 = sbr.rel (%p306) target = $region52
        $region51: #{tpu_custom_call.1} parent=47 // pred_region
          %s309 = sand.u32 %s122, 1
          %s310 = scalar_lea.sflag [#allocation4], %s309
          %s311 = sand.u32 %s122, 1
          %s312 = smul.addr %s311, 8
          %s313 = scalar_lea.vmem [#allocation7], %s312
          %315 = dma.done %s310, 128
        $region52: #{tpu_custom_call.1} parent=47 // pred_fallthru
          _
      $region48: #{tpu_custom_call.1} parent=5 // pred_fallthru
        _
    $region6: #{tpu_custom_call.1} parent=1 // loop_footer
      %s20 = sadd.s32 1, %s16
    $region7: #{tpu_custom_call.1} parent=1 // loop_footer_branch
      %15 = sbr.rel target = $region3
    $region8: #{tpu_custom_call.1} parent=1 // loop_exit
      _
    %316 = vsyncpa [#allocation3], 1
    %s317 = scalar_lea.sflag [#allocation3], 1
    %318 = vsyncpa %s317, 1
    %319 = vsyncpa [#allocation6], 1
    %320 = vsyncpa [#allocation4], 1
    %s321 = scalar_lea.sflag [#allocation4], 1
    %322 = vsyncpa %s321, 1

</llo_original>
